<compile_context>
chip_gen: v6e
topology: v6e:2x2x1
jax: 0.10.0
libtpu: 0.0.40
codegen_flags: <defaults>
</compile_context>

<pallas_src>
import jax
import jax.numpy as jnp
from jax.experimental import pallas as pl
from jax.experimental.pallas import tpu as pltpu


# ------------------------------ Pallas kernel -------------------------------

def gnn_fused_kernel(a_ref, x_ref, w_ref, b_ref, p_ref, wl_ref, bl_ref, o_ref):
    """Entire GNN forward pass in one kernel (everything VMEM-resident).

    a:  [N, N]     bf16  normalized adjacency D^-1/2 (A + I) D^-1/2
    x:  [N, H]     bf16  input node features, zero-padded from Fin to H columns
    w:  [3, H, H]  bf16  GCN weights (BN scale folded in); w[0] zero-padded rows
    b:  [3, 1, H]  f32   GCN biases with BN (scale, shift) folded in
    p:  [Gp, N]    bf16  mean-pooling matrix, zero-padded to Gp (=8) rows
    wl: [H, Cp]    bf16  final Linear weight, zero-padded to Cp (=128) columns
    bl: [1, Cp]    f32   final Linear bias, zero-padded
    o:  [Gp, Cp]   f32   lane-dense output block
    """
    a = a_ref[...]                                                   # bf16 [N, N]

    # ---- layer 1: aggregate first, (A @ X) @ W1'  (zero pads cancel exactly)
    ax = jnp.dot(a, x_ref[...], preferred_element_type=jnp.float32)           # [N, H]
    z = jnp.dot(ax.astype(jnp.bfloat16), w_ref[0],
                preferred_element_type=jnp.float32) + b_ref[0]                # [N, H]
    h = jnp.maximum(z, 0.1 * z)           # LeakyReLU(0.1); Dropout eval = identity

    # ---- layer 2: A @ (h @ W2')
    hw = jnp.dot(h.astype(jnp.bfloat16), w_ref[1],
                 preferred_element_type=jnp.float32)                          # [N, H]
    z = jnp.dot(a, hw.astype(jnp.bfloat16),
                preferred_element_type=jnp.float32) + b_ref[1]
    h = jnp.maximum(z, 0.1 * z)

    # ---- layer 3: A @ (h @ W3')
    hw = jnp.dot(h.astype(jnp.bfloat16), w_ref[2],
                 preferred_element_type=jnp.float32)
    z = jnp.dot(a, hw.astype(jnp.bfloat16),
                preferred_element_type=jnp.float32) + b_ref[2]
    h = jnp.maximum(z, 0.1 * z)

    # ---- global_mean_pool (pooling-matrix matmul) + final Linear (bf16 MXU)
    pooled = jnp.dot(p_ref[...], h.astype(jnp.bfloat16),
                     preferred_element_type=jnp.float32)                      # [Gp, H]
    o_ref[...] = (jnp.dot(pooled.astype(jnp.bfloat16), wl_ref[...],
                          preferred_element_type=jnp.float32) + bl_ref[...])  # [Gp, Cp]


# ------------------------------- JAX wrapper ---------------------------------

def gnn_fused(a_hat, x_pad, w_packed, b_packed, p_pad, wl_pad, bl_pad):
    n = a_hat.shape[0]
    h = w_packed.shape[2]
    g_pad = p_pad.shape[0]
    c_pad = wl_pad.shape[1]

    # Advisory cost estimate so XLA can schedule/overlap around the tiny call.
    flops = 3 * (2 * n * n * h) + 3 * (2 * n * h * h) \
        + 2 * g_pad * n * h + 2 * g_pad * h * c_pad
    bytes_accessed = sum(int(v.size) * v.dtype.itemsize
                         for v in (a_hat, x_pad, w_packed, b_packed,
                                   p_pad, wl_pad, bl_pad)) + g_pad * c_pad * 4

    vmem = pl.BlockSpec(memory_space=pltpu.MemorySpace.VMEM)
    return pl.pallas_call(
        gnn_fused_kernel,
        out_shape=jax.ShapeDtypeStruct((g_pad, c_pad), jnp.float32),
        in_specs=[vmem] * 7,
        out_specs=vmem,
        cost_estimate=pl.CostEstimate(flops=int(flops), transcendentals=0,
                                      bytes_accessed=int(bytes_accessed)),
    )(a_hat, x_pad, w_packed, b_packed, p_pad, wl_pad, bl_pad)


# ------------------------------ Glue (plain JAX) -----------------------------

def build_normalized_adjacency(edge_index, num_nodes):
    """Dense D^-1/2 (A + I) D^-1/2, messages flow src -> dst (PyG GCNConv)."""
    src, dst = edge_index[0], edge_index[1]
    a = jnp.zeros((num_nodes, num_nodes), jnp.float32)
    # .add (not .set) so duplicated edges aggregate like PyG's scatter_add.
    a = a.at[dst, src].add(1.0)                       # A[i, j] = #edges j -> i
    a = a + jnp.eye(num_nodes, dtype=jnp.float32)     # self loops
    deg = a.sum(axis=1)
    dinv = jnp.where(deg > 0, 1.0 / jnp.sqrt(deg), 0.0)
    return a * dinv[:, None] * dinv[None, :]


def build_pooling_matrix(batch, num_graphs, num_nodes):
    """P[g, n] = 1/|graph g| if batch[n] == g else 0  (global_mean_pool)."""
    onehot = (batch[None, :] == jnp.arange(num_graphs)[:, None]).astype(jnp.float32)
    counts = jnp.maximum(onehot.sum(axis=1, keepdims=True), 1.0)
    return onehot / counts


def fold_bn_into_gcn(w, b, scale, shift):
    """(A x W + b) * scale + shift  ==  A x (W * scale) + (b * scale + shift)."""
    return w * scale, b * scale + shift


def glorot(key, fan_in, fan_out):
    limit = jnp.sqrt(6.0 / (fan_in + fan_out))
    return jax.random.uniform(
        key, (fan_in, fan_out), jnp.float32, minval=-limit, maxval=limit
    )


def make_bn_affine(hidden, salt):
    """Deterministic eval-mode BatchNorm folded into (scale, shift)."""
    idx = jnp.arange(hidden, dtype=jnp.float32)
    gamma = 1.0 + 0.01 * jnp.cos(idx + salt)
    beta = 0.01 * jnp.sin(idx + salt)
    running_mean = 0.02 * jnp.sin(0.5 * idx + salt)
    running_var = 1.0 + 0.05 * jnp.cos(0.3 * idx + salt) ** 2
    eps = 1e-5
    scale = gamma / jnp.sqrt(running_var + eps)
    shift = beta - running_mean * scale
    return scale.reshape(1, hidden), shift.reshape(1, hidden)


def gnn_forward(x, edge_index, batch, params, num_graphs):
    n, fin = x.shape
    h = params["w2"].shape[0]
    c = params["w_lin"].shape[1]

    a_hat = build_normalized_adjacency(edge_index, n).astype(jnp.bfloat16)

    # global_mean_pool as a matmul; pad to 8 rows so the kernel output block is
    # sublane-aligned (8) and lane-dense (128).
    g_pad = max(8, num_graphs)
    p = build_pooling_matrix(batch, num_graphs, n)
    p_pad = jnp.zeros((g_pad, n), jnp.float32).at[:num_graphs].set(p)

    # Fold BN (eval affine) into the GCN weights/bias once, outside the kernel.
    w1, b1 = fold_bn_into_gcn(params["w1"], params["b1"],
                              params["bn1_scale"], params["bn1_shift"])
    w2, b2 = fold_bn_into_gcn(params["w2"], params["b2"],
                              params["bn2_scale"], params["bn2_shift"])
    w3, b3 = fold_bn_into_gcn(params["w3"], params["b3"],
                              params["bn3_scale"], params["bn3_shift"])

    # Pack weights/biases: pad w1 [Fin,H] -> [H,H] with zero ROWS and x
    # [N,Fin] -> [N,H] with zero COLUMNS so the padded contraction is exact.
    w1_pad = jnp.zeros((h, h), jnp.float32).at[:fin].set(w1)
    w_packed = jnp.stack([w1_pad, w2, w3]).astype(jnp.bfloat16)          # [3, H, H]
    b_packed = jnp.stack([b1, b2, b3]).astype(jnp.float32)               # [3, 1, H]
    x_pad = jnp.zeros((n, h), jnp.float32).at[:, :fin].set(x).astype(jnp.bfloat16)

    # Final Linear padded to a lane-dense (128-wide) output.
    c_pad = 128
    wl_pad = (jnp.zeros((h, c_pad), jnp.float32)
              .at[:, :c].set(params["w_lin"]).astype(jnp.bfloat16))
    bl_pad = jnp.zeros((1, c_pad), jnp.float32).at[:, :c].set(params["b_lin"])

    out_full = gnn_fused(a_hat, x_pad, w_packed, b_packed,
                         p_pad.astype(jnp.bfloat16), wl_pad, bl_pad)
    out = out_full[:num_graphs, :c]

    # Dropout layers and the final F.dropout are identity in eval mode.
    losses = jnp.zeros((0,), jnp.float32)     # torch.Tensor([]) equivalent
    return out, losses


def gnn_reference(x, edge_index, batch, params, num_graphs):
    """Pure-JAX f32 reference of the same forward (for a tolerance check)."""
    a = build_normalized_adjacency(edge_index, x.shape[0])
    p = build_pooling_matrix(batch, num_graphs, x.shape[0])

    def layer(hh, w, b, scale, shift):
        z = a @ (hh @ w) + b            # GCNConv (dense form) + bias
        z = z * scale + shift           # BatchNorm eval affine
        return jnp.maximum(z, 0.1 * z)  # LeakyReLU(0.1); Dropout = identity

    hh = layer(x, params["w1"], params["b1"], params["bn1_scale"], params["bn1_shift"])
    hh = layer(hh, params["w2"], params["b2"], params["bn2_scale"], params["bn2_shift"])
    hh = layer(hh, params["w3"], params["b3"], params["bn3_scale"], params["bn3_shift"])
    return (p @ hh) @ params["w_lin"] + params["b_lin"]


# ---------------------------------- main --------------------------------------

if __name__ == "__main__":
    num_node_features = 16
    hidden_channels = 32
    num_classes = 4
    nodes_per_graph = 32
    num_graphs = 2
    num_nodes = nodes_per_graph * num_graphs   # 64

    # Deterministic inputs.
    key = jax.random.PRNGKey(0)
    kx, ke = jax.random.split(key)
    x = jax.random.normal(kx, (num_nodes, num_node_features), jnp.float32)

    # Ring graph within each of the 2 graphs, both directions (no self loops).
    node_ids = jnp.arange(num_nodes)
    graph_of = node_ids // nodes_per_graph
    nxt = (node_ids + 1) % nodes_per_graph + graph_of * nodes_per_graph
    src = jnp.concatenate([node_ids, nxt])
    dst = jnp.concatenate([nxt, node_ids])
    edge_index = jnp.stack([src, dst]).astype(jnp.int32)     # [2, 128]
    batch = graph_of.astype(jnp.int32)                        # [64]

    # Deterministic parameters (mirrors torch.manual_seed(12345) spirit).
    pkey = jax.random.PRNGKey(12345)
    k1, k2, k3, k4 = jax.random.split(pkey, 4)
    params = {
        "w1": glorot(k1, num_node_features, hidden_channels),
        "b1": jnp.zeros((1, hidden_channels), jnp.float32),
        "w2": glorot(k2, hidden_channels, hidden_channels),
        "b2": jnp.zeros((1, hidden_channels), jnp.float32),
        "w3": glorot(k3, hidden_channels, hidden_channels),
        "b3": jnp.zeros((1, hidden_channels), jnp.float32),
        "w_lin": glorot(k4, hidden_channels, num_classes),
        "b_lin": jnp.full((1, num_classes), 0.01, jnp.float32),
    }
    for i, salt in [(1, 0.0), (2, 1.0), (3, 2.0)]:
        s, t = make_bn_affine(hidden_channels, salt)
        params[f"bn{i}_scale"] = s
        params[f"bn{i}_shift"] = t

    out, losses = gnn_forward(x, edge_index, batch, params, num_graphs)
    jax.block_until_ready(out)
    jax.block_until_ready(losses)

    assert out.shape == (num_graphs, num_classes)
    assert losses.shape == (0,)
    assert bool(jnp.all(jnp.isfinite(out)))

    # Parity vs. f32 reference (bf16 matmul operands -> loose tolerance).
    ref = gnn_reference(x, edge_index, batch, params, num_graphs)
    assert bool(jnp.allclose(out, ref, atol=1e-1, rtol=1e-1))

    print("KERNEL_OK")
</pallas_src>

<mosaic_0001>
module attributes {stable_mosaic.version = 11 : i64} {
  func.func @gnn_fused_kernel(%arg0: memref<64x64xbf16, #tpu.memory_space<vmem>>, %arg1: memref<64x32xbf16, #tpu.memory_space<vmem>>, %arg2: memref<3x32x32xbf16, #tpu.memory_space<vmem>>, %arg3: memref<3x1x32xf32, #tpu.memory_space<vmem>>, %arg4: memref<8x64xbf16, #tpu.memory_space<vmem>>, %arg5: memref<32x128xbf16, #tpu.memory_space<vmem>>, %arg6: memref<1x128xf32, #tpu.memory_space<vmem>>, %arg7: memref<8x128xf32, #tpu.memory_space<vmem>>) attributes {dimension_semantics = [], scalar_prefetch = 0 : i64, scratch_operands = 0 : i64, tpu.core_type = #tpu.core_type<tc>} {
    %c0 = arith.constant 0 : index
    %c0_0 = arith.constant 0 : index
    %0 = vector.load %arg0[%c0, %c0_0] : memref<64x64xbf16, #tpu.memory_space<vmem>>, vector<64x64xbf16>
    %c0_1 = arith.constant 0 : index
    %c0_2 = arith.constant 0 : index
    %1 = vector.load %arg1[%c0_1, %c0_2] : memref<64x32xbf16, #tpu.memory_space<vmem>>, vector<64x32xbf16>
    %cst = arith.constant dense<0.000000e+00> : vector<64x32xf32>
    %2 = tpu.matmul %0, %1, %cst {dimension_numbers = #tpu.dot_dimension_numbers<[1], [0], [0], [1], [0, 0, 1, 1], [], []>} : vector<64x64xbf16>, vector<64x32xbf16>, vector<64x32xf32> -> vector<64x32xf32>
    %3 = arith.truncf %2 : vector<64x32xf32> to vector<64x32xbf16>
    %c0_3 = arith.constant 0 : index
    %c0_4 = arith.constant 0 : index
    %c0_5 = arith.constant 0 : index
    %4 = vector.load %arg2[%c0_3, %c0_4, %c0_5] : memref<3x32x32xbf16, #tpu.memory_space<vmem>>, vector<1x32x32xbf16>
    %5 = vector.shape_cast %4 : vector<1x32x32xbf16> to vector<32x32xbf16>
    %cst_6 = arith.constant dense<0.000000e+00> : vector<64x32xf32>
    %6 = tpu.matmul %3, %5, %cst_6 {dimension_numbers = #tpu.dot_dimension_numbers<[1], [0], [0], [1], [0, 0, 1, 1], [], []>} : vector<64x32xbf16>, vector<32x32xbf16>, vector<64x32xf32> -> vector<64x32xf32>
    %c0_7 = arith.constant 0 : index
    %c0_8 = arith.constant 0 : index
    %c0_9 = arith.constant 0 : index
    %7 = vector.load %arg3[%c0_7, %c0_8, %c0_9] : memref<3x1x32xf32, #tpu.memory_space<vmem>>, vector<1x1x32xf32>
    %8 = vector.shape_cast %7 : vector<1x1x32xf32> to vector<1x32xf32>
    %9 = vector.broadcast %8 : vector<1x32xf32> to vector<64x32xf32>
    %10 = arith.addf %6, %9 : vector<64x32xf32>
    %cst_10 = arith.constant 1.000000e-01 : f32
    %11 = vector.broadcast %cst_10 : f32 to vector<64x32xf32>
    %12 = arith.mulf %11, %10 : vector<64x32xf32>
    %13 = arith.maximumf %10, %12 : vector<64x32xf32>
    %14 = arith.truncf %13 : vector<64x32xf32> to vector<64x32xbf16>
    %c1 = arith.constant 1 : index
    %c0_11 = arith.constant 0 : index
    %c0_12 = arith.constant 0 : index
    %15 = vector.load %arg2[%c1, %c0_11, %c0_12] : memref<3x32x32xbf16, #tpu.memory_space<vmem>>, vector<1x32x32xbf16>
    %16 = vector.shape_cast %15 : vector<1x32x32xbf16> to vector<32x32xbf16>
    %cst_13 = arith.constant dense<0.000000e+00> : vector<64x32xf32>
    %17 = tpu.matmul %14, %16, %cst_13 {dimension_numbers = #tpu.dot_dimension_numbers<[1], [0], [0], [1], [0, 0, 1, 1], [], []>} : vector<64x32xbf16>, vector<32x32xbf16>, vector<64x32xf32> -> vector<64x32xf32>
    %18 = arith.truncf %17 : vector<64x32xf32> to vector<64x32xbf16>
    %cst_14 = arith.constant dense<0.000000e+00> : vector<64x32xf32>
    %19 = tpu.matmul %0, %18, %cst_14 {dimension_numbers = #tpu.dot_dimension_numbers<[1], [0], [0], [1], [0, 0, 1, 1], [], []>} : vector<64x64xbf16>, vector<64x32xbf16>, vector<64x32xf32> -> vector<64x32xf32>
    %c1_15 = arith.constant 1 : index
    %c0_16 = arith.constant 0 : index
    %c0_17 = arith.constant 0 : index
    %20 = vector.load %arg3[%c1_15, %c0_16, %c0_17] : memref<3x1x32xf32, #tpu.memory_space<vmem>>, vector<1x1x32xf32>
    %21 = vector.shape_cast %20 : vector<1x1x32xf32> to vector<1x32xf32>
    %22 = vector.broadcast %21 : vector<1x32xf32> to vector<64x32xf32>
    %23 = arith.addf %19, %22 : vector<64x32xf32>
    %cst_18 = arith.constant 1.000000e-01 : f32
    %24 = vector.broadcast %cst_18 : f32 to vector<64x32xf32>
    %25 = arith.mulf %24, %23 : vector<64x32xf32>
    %26 = arith.maximumf %23, %25 : vector<64x32xf32>
    %27 = arith.truncf %26 : vector<64x32xf32> to vector<64x32xbf16>
    %c2 = arith.constant 2 : index
    %c0_19 = arith.constant 0 : index
    %c0_20 = arith.constant 0 : index
    %28 = vector.load %arg2[%c2, %c0_19, %c0_20] : memref<3x32x32xbf16, #tpu.memory_space<vmem>>, vector<1x32x32xbf16>
    %29 = vector.shape_cast %28 : vector<1x32x32xbf16> to vector<32x32xbf16>
    %cst_21 = arith.constant dense<0.000000e+00> : vector<64x32xf32>
    %30 = tpu.matmul %27, %29, %cst_21 {dimension_numbers = #tpu.dot_dimension_numbers<[1], [0], [0], [1], [0, 0, 1, 1], [], []>} : vector<64x32xbf16>, vector<32x32xbf16>, vector<64x32xf32> -> vector<64x32xf32>
    %31 = arith.truncf %30 : vector<64x32xf32> to vector<64x32xbf16>
    %cst_22 = arith.constant dense<0.000000e+00> : vector<64x32xf32>
    %32 = tpu.matmul %0, %31, %cst_22 {dimension_numbers = #tpu.dot_dimension_numbers<[1], [0], [0], [1], [0, 0, 1, 1], [], []>} : vector<64x64xbf16>, vector<64x32xbf16>, vector<64x32xf32> -> vector<64x32xf32>
    %c2_23 = arith.constant 2 : index
    %c0_24 = arith.constant 0 : index
    %c0_25 = arith.constant 0 : index
    %33 = vector.load %arg3[%c2_23, %c0_24, %c0_25] : memref<3x1x32xf32, #tpu.memory_space<vmem>>, vector<1x1x32xf32>
    %34 = vector.shape_cast %33 : vector<1x1x32xf32> to vector<1x32xf32>
    %35 = vector.broadcast %34 : vector<1x32xf32> to vector<64x32xf32>
    %36 = arith.addf %32, %35 : vector<64x32xf32>
    %cst_26 = arith.constant 1.000000e-01 : f32
    %37 = vector.broadcast %cst_26 : f32 to vector<64x32xf32>
    %38 = arith.mulf %37, %36 : vector<64x32xf32>
    %39 = arith.maximumf %36, %38 : vector<64x32xf32>
    %c0_27 = arith.constant 0 : index
    %c0_28 = arith.constant 0 : index
    %40 = vector.load %arg4[%c0_27, %c0_28] : memref<8x64xbf16, #tpu.memory_space<vmem>>, vector<8x64xbf16>
    %41 = arith.truncf %39 : vector<64x32xf32> to vector<64x32xbf16>
    %cst_29 = arith.constant dense<0.000000e+00> : vector<8x32xf32>
    %42 = tpu.matmul %40, %41, %cst_29 {dimension_numbers = #tpu.dot_dimension_numbers<[1], [0], [0], [1], [0, 0, 1, 1], [], []>} : vector<8x64xbf16>, vector<64x32xbf16>, vector<8x32xf32> -> vector<8x32xf32>
    %43 = arith.truncf %42 : vector<8x32xf32> to vector<8x32xbf16>
    %c0_30 = arith.constant 0 : index
    %c0_31 = arith.constant 0 : index
    %44 = vector.load %arg5[%c0_30, %c0_31] : memref<32x128xbf16, #tpu.memory_space<vmem>>, vector<32x128xbf16>
    %cst_32 = arith.constant dense<0.000000e+00> : vector<8x128xf32>
    %45 = tpu.matmul %43, %44, %cst_32 {dimension_numbers = #tpu.dot_dimension_numbers<[1], [0], [0], [1], [0, 0, 1, 1], [], []>} : vector<8x32xbf16>, vector<32x128xbf16>, vector<8x128xf32> -> vector<8x128xf32>
    %c0_33 = arith.constant 0 : index
    %c0_34 = arith.constant 0 : index
    %46 = vector.load %arg6[%c0_33, %c0_34] : memref<1x128xf32, #tpu.memory_space<vmem>>, vector<1x128xf32>
    %47 = vector.broadcast %46 : vector<1x128xf32> to vector<8x128xf32>
    %48 = arith.addf %45, %47 : vector<8x128xf32>
    %c0_35 = arith.constant 0 : index
    %c0_36 = arith.constant 0 : index
    %49 = vector.load %arg7[%c0_35, %c0_36] : memref<8x128xf32, #tpu.memory_space<vmem>>, vector<8x128xf32>
    tpu.vector_store %arg7[%c0_35, %c0_36], %48 {strides = array<i32>} : memref<8x128xf32, #tpu.memory_space<vmem>>, vector<8x128xf32>,
    return
  }
}

</mosaic_0001>

<llo_original>
// kernel: tpu_custom_call.1
$region0: #{tpu_custom_call.1}
  #allocation0 [shape = 'u32[]', space=smem, size = 0x4, offset = 0x4, fixed_abs, tag = 'smem constant byte address 0x4 - core index']
  #allocation1 [shape = 'u32[144,128]{1,0:T(1,128)}', space=vmem, size = 0x12000, scoped, tag = 'internal scratch']
  %s0 = inlined_call_operand.hbm [shape: bf16[64,64], index: 0, kind: input, shape index: {}]
  %s1 = inlined_call_operand.vmem [shape: bf16[64,32], index: 1, kind: input, shape index: {}]
  %s2 = inlined_call_operand.vmem [shape: bf16[3,32,32], index: 2, kind: input, shape index: {}]
  %s3 = inlined_call_operand.hbm [shape: f32[3,1,32], index: 3, kind: input, shape index: {}]
  %s4 = inlined_call_operand.vmem [shape: bf16[8,64], index: 4, kind: input, shape index: {}]
  %s5 = inlined_call_operand.hbm [shape: bf16[32,128], index: 5, kind: input, shape index: {}]
  %s6 = inlined_call_operand.vmem [shape: f32[1,128], index: 6, kind: input, shape index: {}]
  %s7 = inlined_call_operand.hbm [shape: f32[8,128], index: 7, kind: output, shape index: {}]
  %s8 = sld [smem:[#allocation0]]
  $region50: #{tpu_custom_call.1} parent=0
    _
  %s10 = ssub.s32 1, %s8
  %s11 = scalar_select 0, %s10, %s8
  $region1: #{tpu_custom_call.1} parent=0
    #allocation2 [shape = 'u8[16384]{0}', space=vmem, size = 0x4000, scoped, tag = 'input window, operand 0, single buffered']
    #allocation3 [shape = 's32[1]{0}', space=sflag, size = 0x4, scoped, tag = 'scoped memory for tpu_custom_call.1']
    #allocation4 [shape = 's32[1]{0}', space=sflag, size = 0x4, scoped, tag = 'scoped memory for tpu_custom_call.1']
    #allocation5 [shape = 'u8[1536]{0}', space=vmem, size = 0x800, scoped, tag = 'input window, operand 3, single buffered']
    #allocation6 [shape = 's32[1]{0}', space=sflag, size = 0x4, scoped, tag = 'scoped memory for tpu_custom_call.1']
    #allocation7 [shape = 'u8[8192]{0}', space=vmem, size = 0x2000, scoped, tag = 'input window, operand 5, single buffered']
    #allocation8 [shape = 'u8[4096]{0}', space=vmem, size = 0x1000, scoped, tag = 'output window, operand 0, single buffered']
    %12 = vsyncpa [#allocation3], 0
    %13 = vsyncpa [#allocation6], 0
    %14 = vsyncpa [#allocation4], 0
    // Predicated region
    $region2: #{tpu_custom_call.1} parent=1 // pred_check
      _
    $region3: #{tpu_custom_call.1} parent=1 // pred_check_branch
      %16 = sbr.rel (0) target = $region5
    $region4: #{tpu_custom_call.1} parent=1 // pred_region
      %s18 = ssub.s32 512, 512
      %19 = vsyncadd [#allocation3], %s18
      %s20 = sshll.u32 [#allocation2], 4
      %s21 = int_to_ptr.vmem [resolvable:$true] %s20
      %26 = dma.hbm_to_vmem [thread:$0]  %s0, 512, %s21, [#allocation3], 64, 64, 4
    $region5: #{tpu_custom_call.1} parent=1 // pred_fallthru
      _
    // Predicated region
    $region6: #{tpu_custom_call.1} parent=1 // pred_check
      _
    $region7: #{tpu_custom_call.1} parent=1 // pred_check_branch
      %28 = sbr.rel (0) target = $region9
    $region8: #{tpu_custom_call.1} parent=1 // pred_region
      _
    $region9: #{tpu_custom_call.1} parent=1 // pred_fallthru
      _
    // Predicated region
    $region10: #{tpu_custom_call.1} parent=1 // pred_check
      _
    $region11: #{tpu_custom_call.1} parent=1 // pred_check_branch
      %30 = sbr.rel (0) target = $region13
    $region12: #{tpu_custom_call.1} parent=1 // pred_region
      _
    $region13: #{tpu_custom_call.1} parent=1 // pred_fallthru
      _
    // Predicated region
    $region14: #{tpu_custom_call.1} parent=1 // pred_check
      _
    $region15: #{tpu_custom_call.1} parent=1 // pred_check_branch
      %32 = sbr.rel (0) target = $region17
    $region16: #{tpu_custom_call.1} parent=1 // pred_region
      %s34 = ssub.s32 48, 48
      %35 = vsyncadd [#allocation6], %s34
      %s36 = sshll.u32 [#allocation5], 4
      %s37 = int_to_ptr.vmem [resolvable:$true] %s36
      %42 = dma.hbm_to_vmem [thread:$0]  %s3, 48, %s37, [#allocation6], 16, 16, 1
    $region17: #{tpu_custom_call.1} parent=1 // pred_fallthru
      _
    // Predicated region
    $region18: #{tpu_custom_call.1} parent=1 // pred_check
      _
    $region19: #{tpu_custom_call.1} parent=1 // pred_check_branch
      %44 = sbr.rel (0) target = $region21
    $region20: #{tpu_custom_call.1} parent=1 // pred_region
      _
    $region21: #{tpu_custom_call.1} parent=1 // pred_fallthru
      _
    // Predicated region
    $region22: #{tpu_custom_call.1} parent=1 // pred_check
      _
    $region23: #{tpu_custom_call.1} parent=1 // pred_check_branch
      %46 = sbr.rel (0) target = $region25
    $region24: #{tpu_custom_call.1} parent=1 // pred_region
      %s48 = ssub.s32 256, 256
      %49 = vsyncadd [#allocation6], %s48
      %s50 = sshll.u32 [#allocation7], 4
      %s51 = int_to_ptr.vmem [resolvable:$true] %s50
      %56 = dma.hbm_to_vmem [thread:$0]  %s5, 256, %s51, [#allocation6], 64, 64, 4
    $region25: #{tpu_custom_call.1} parent=1 // pred_fallthru
      _
    // Predicated region
    $region26: #{tpu_custom_call.1} parent=1 // pred_check
      _
    $region27: #{tpu_custom_call.1} parent=1 // pred_check_branch
      %58 = sbr.rel (0) target = $region29
    $region28: #{tpu_custom_call.1} parent=1 // pred_region
      _
    $region29: #{tpu_custom_call.1} parent=1 // pred_fallthru
      _
    // Predicated region
    $region30: #{tpu_custom_call.1} parent=1 // pred_check
      _
    $region31: #{tpu_custom_call.1} parent=1 // pred_check_branch
      %60 = sbr.rel (0) target = $region33
    $region32: #{tpu_custom_call.1} parent=1 // pred_region
      %61 = dma.done [#allocation3], 512
    $region33: #{tpu_custom_call.1} parent=1 // pred_fallthru
      _
    // Predicated region
    $region34: #{tpu_custom_call.1} parent=1 // pred_check
      _
    $region35: #{tpu_custom_call.1} parent=1 // pred_check_branch
      %63 = sbr.rel (0) target = $region37
    $region36: #{tpu_custom_call.1} parent=1 // pred_region
      %64 = dma.done [#allocation6], 48
    $region37: #{tpu_custom_call.1} parent=1 // pred_fallthru
      _
    // Predicated region
    $region38: #{tpu_custom_call.1} parent=1 // pred_check
      _
    $region39: #{tpu_custom_call.1} parent=1 // pred_check_branch
      %66 = sbr.rel (0) target = $region41
    $region40: #{tpu_custom_call.1} parent=1 // pred_region
      %67 = dma.done [#allocation6], 256
    $region41: #{tpu_custom_call.1} parent=1 // pred_fallthru
      _
    %v69 = vld [vmem:[#allocation2] sm:$0xf]
    %v70 = vld [vmem:[#allocation2 + $0x4] sm:$0xf]
    %v71 = vld [vmem:[#allocation2 + $0x8] sm:$0xf]
    %v72 = vld [vmem:[#allocation2 + $0xc] sm:$0xf]
    %v73 = vld [vmem:[#allocation2 + $0x10] sm:$0xf]
    %v74 = vld [vmem:[#allocation2 + $0x14] sm:$0xf]
    %v75 = vld [vmem:[#allocation2 + $0x18] sm:$0xf]
    %v76 = vld [vmem:[#allocation2 + $0x1c] sm:$0xf]
    %v77 = vld [vmem:[%s1] sm:$0xf]
    %v78 = vld [vmem:[%s1 + $0x4] sm:$0xf]
    %v79 = vld [vmem:[%s1 + $0x8] sm:$0xf]
    %v80 = vld [vmem:[%s1 + $0xc] sm:$0xf]
    %v81 = vld [vmem:[%s1 + $0x10] sm:$0xf]
    %v82 = vld [vmem:[%s1 + $0x14] sm:$0xf]
    %v83 = vld [vmem:[%s1 + $0x18] sm:$0xf]
    %v84 = vld [vmem:[%s1 + $0x1c] sm:$0xf]
    %v93 = vunpack.c.l.b16 %v69
    %v94 = vunpack.c.l.b16 %v70
    %v95 = vunpack.c.l.b16 %v71
    %v96 = vunpack.c.l.b16 %v72
    %v97 = vunpack.c.l.b16 %v73
    %v98 = vunpack.c.l.b16 %v74
    %v99 = vunpack.c.l.b16 %v75
    %v100 = vunpack.c.l.b16 %v76
    %v101 = vpack.c.b16 %v94, %v93
    %v102 = vpack.c.b16 %v96, %v95
    %v103 = vpack.c.b16 %v98, %v97
    %v104 = vpack.c.b16 %v100, %v99
    %v113 = vunpack.c.l.b16 %v77
    %v114 = vunpack.c.l.b16 %v78
    %v115 = vunpack.c.l.b16 %v79
    %v116 = vunpack.c.l.b16 %v80
    %v117 = vunpack.c.l.b16 %v81
    %v118 = vunpack.c.l.b16 %v82
    %v119 = vunpack.c.l.b16 %v83
    %v120 = vunpack.c.l.b16 %v84
    %v121 = vpack.c.b16 %v114, %v113
    %v122 = vpack.c.b16 %v116, %v115
    %v123 = vpack.c.b16 %v118, %v117
    %v124 = vpack.c.b16 %v120, %v119
    %vm129 = vcmask 523264
    %v131 = vsel %vm129, %v101, 0
    %v134 = vsel %vm129, %v102, 0
    %v137 = vsel %vm129, %v103, 0
    %v140 = vsel %vm129, %v104, 0
    %142 = vmatprep.subr.bf16.mxu0 0
    %143 = vmatpush1.bf16.msra.mxu0 0
    %144 = vmatprep.subr.bf16.mxu0 0
    %145 = vmatpush1.bf16.msra.mxu0 0
    %146 = vmatprep.subr.bf16.mxu0 0
    %147 = vmatpush1.bf16.msra.mxu0 0
    %148 = vmatprep.subr.bf16.mxu0 0
    %149 = vmatpush1.bf16.msra.mxu0 0
    %150 = vmatprep.subr.bf16.mxu0 0
    %151 = vmatpush1.bf16.msra.mxu0 %v124
    %152 = vmatprep.subr.bf16.mxu0 0
    %153 = vmatpush1.bf16.msra.mxu0 %v123
    %154 = vmatprep.subr.bf16.mxu0 0
    %155 = vmatpush1.bf16.msra.mxu0 %v122
    %156 = vmatprep.subr.bf16.mxu0 0
    %157 = vmatpush1.bf16.msra.mxu0 %v121
    %158 = vmatprep.subr.bf16.mxu0 0
    %159 = vmatpush2.bf16.msra.mxu0 0
    %160 = vmatprep.subr.bf16.mxu0 0
    %161 = vmatpush2.bf16.msra.mxu0 0
    %162 = vmatprep.subr.bf16.mxu0 0
    %163 = vmatpush2.bf16.msra.mxu0 0
    %164 = vmatprep.subr.bf16.mxu0 0
    %165 = vmatpush2.bf16.msra.mxu0 0
    %166 = vmatprep.subr.bf16.mxu0 0
    %167 = vmatpush2.bf16.msra.mxu0 0
    %168 = vmatprep.subr.bf16.mxu0 0
    %169 = vmatpush2.bf16.msra.mxu0 0
    %170 = vmatprep.subr.bf16.mxu0 0
    %171 = vmatpush2.bf16.msra.mxu0 0
    %172 = vmatprep.subr.bf16.mxu0 0
    %173 = vmatpush2.bf16.msra.mxu0 0
    %174 = vmatprep.mubr.bf16.mxu0 0
    %175 = vmatmul.mubr.bf16.gmra.mxu0 %v131
    %v176 = vpop.f32.mrf.mxu0
    %v177 = vadd.f32 0.0, %v176
    %v178 = vpop.f32.mrf.mxu0
    %v179 = vpop.f32.mrf.mxu0
    %v180 = vadd.f32 0.0, %v179
    %v181 = vpop.f32.mrf.mxu0
    %182 = vmatprep.mubr.bf16.mxu0 0
    %183 = vmatmul.mubr.bf16.gmra.mxu0 %v134
    %v184 = vpop.f32.mrf.mxu0
    %v185 = vadd.f32 0.0, %v184
    %v186 = vpop.f32.mrf.mxu0
    %v187 = vpop.f32.mrf.mxu0
    %v188 = vadd.f32 0.0, %v187
    %v189 = vpop.f32.mrf.mxu0
    %190 = vmatprep.mubr.bf16.mxu0 0
    %191 = vmatmul.mubr.bf16.gmra.mxu0 %v137
    %v192 = vpop.f32.mrf.mxu0
    %v193 = vadd.f32 0.0, %v192
    %v194 = vpop.f32.mrf.mxu0
    %v195 = vpop.f32.mrf.mxu0
    %v196 = vadd.f32 0.0, %v195
    %v197 = vpop.f32.mrf.mxu0
    %198 = vmatprep.mubr.bf16.mxu0 0
    %199 = vmatmul.mubr.bf16.gmra.mxu0 %v140
    %v200 = vpop.f32.mrf.mxu0
    %v201 = vadd.f32 0.0, %v200
    %v202 = vpop.f32.mrf.mxu0
    %v203 = vpop.f32.mrf.mxu0
    %v204 = vadd.f32 0.0, %v203
    %v205 = vpop.f32.mrf.mxu0
    %206 = vdwg.mxu0
    %v207 = vpack.c.bf16 %v180, %v177
    %v208 = vpack.c.bf16 %v188, %v185
    %v209 = vpack.c.bf16 %v196, %v193
    %v210 = vpack.c.bf16 %v204, %v201
    %v211 = vld [vmem:[%s2] sm:$0xf]
    %v212 = vld [vmem:[%s2 + $0x4] sm:$0xf]
    %v213 = vld [vmem:[%s2 + $0x8] sm:$0xf]
    %v214 = vld [vmem:[%s2 + $0xc] sm:$0xf]
    %v215 = vld [vmem:[#allocation5] sm:$0x1]
    %v217 = vlaneseq
    %v218 = vshrl.u32 %v217, 7
    %v219 = vsub.s32 0, %v218
    %v220 = vrot.slane %v215, %v219
    %v226 = vunpack.c.l.b16 %v211
    %v227 = vunpack.c.l.b16 %v212
    %v228 = vunpack.c.l.b16 %v213
    %v229 = vunpack.c.l.b16 %v214
    %v230 = vpack.c.b16 %v227, %v226
    %v231 = vpack.c.b16 %v229, %v228
    %vm234 = vcmask 261120
    %v236 = vsel %vm234, %v207, 0
    %v239 = vsel %vm234, %v208, 0
    %v242 = vsel %vm234, %v209, 0
    %v245 = vsel %vm234, %v210, 0
    %247 = vmatprep.subr.bf16.mxu0 0
    %248 = vmatpush1.bf16.msra.mxu0 0
    %249 = vmatprep.subr.bf16.mxu0 0
    %250 = vmatpush1.bf16.msra.mxu0 0
    %251 = vmatprep.subr.bf16.mxu0 0
    %252 = vmatpush1.bf16.msra.mxu0 0
    %253 = vmatprep.subr.bf16.mxu0 0
    %254 = vmatpush1.bf16.msra.mxu0 0
    %255 = vmatprep.subr.bf16.mxu0 0
    %256 = vmatpush1.bf16.msra.mxu0 0
    %257 = vmatprep.subr.bf16.mxu0 0
    %258 = vmatpush1.bf16.msra.mxu0 0
    %259 = vmatprep.subr.bf16.mxu0 0
    %260 = vmatpush1.bf16.msra.mxu0 %v231
    %261 = vmatprep.subr.bf16.mxu0 0
    %262 = vmatpush1.bf16.msra.mxu0 %v230
    %263 = vmatprep.subr.bf16.mxu0 0
    %264 = vmatpush2.bf16.msra.mxu0 0
    %265 = vmatprep.subr.bf16.mxu0 0
    %266 = vmatpush2.bf16.msra.mxu0 0
    %267 = vmatprep.subr.bf16.mxu0 0
    %268 = vmatpush2.bf16.msra.mxu0 0
    %269 = vmatprep.subr.bf16.mxu0 0
    %270 = vmatpush2.bf16.msra.mxu0 0
    %271 = vmatprep.subr.bf16.mxu0 0
    %272 = vmatpush2.bf16.msra.mxu0 0
    %273 = vmatprep.subr.bf16.mxu0 0
    %274 = vmatpush2.bf16.msra.mxu0 0
    %275 = vmatprep.subr.bf16.mxu0 0
    %276 = vmatpush2.bf16.msra.mxu0 0
    %277 = vmatprep.subr.bf16.mxu0 0
    %278 = vmatpush2.bf16.msra.mxu0 0
    %279 = vmatprep.mubr.bf16.mxu0 0
    %280 = vmatmul.mubr.bf16.gmra.mxu0 %v236
    %v281 = vpop.f32.mrf.mxu0
    %v282 = vadd.f32 %v220, %v281
    %v283 = vpop.f32.mrf.mxu0
    %v284 = vpop.f32.mrf.mxu0
    %v285 = vadd.f32 %v220, %v284
    %v286 = vpop.f32.mrf.mxu0
    %287 = vmatprep.mubr.bf16.mxu0 0
    %288 = vmatmul.mubr.bf16.gmra.mxu0 %v239
    %v289 = vpop.f32.mrf.mxu0
    %v290 = vadd.f32 %v220, %v289
    %v291 = vpop.f32.mrf.mxu0
    %v292 = vpop.f32.mrf.mxu0
    %v293 = vadd.f32 %v220, %v292
    %v294 = vpop.f32.mrf.mxu0
    %295 = vmatprep.mubr.bf16.mxu0 0
    %296 = vmatmul.mubr.bf16.gmra.mxu0 %v242
    %v297 = vpop.f32.mrf.mxu0
    %v298 = vadd.f32 %v220, %v297
    %v299 = vpop.f32.mrf.mxu0
    %v300 = vpop.f32.mrf.mxu0
    %v301 = vadd.f32 %v220, %v300
    %v302 = vpop.f32.mrf.mxu0
    %303 = vmatprep.mubr.bf16.mxu0 0
    %304 = vmatmul.mubr.bf16.gmra.mxu0 %v245
    %v305 = vpop.f32.mrf.mxu0
    %v306 = vadd.f32 %v220, %v305
    %v307 = vpop.f32.mrf.mxu0
    %v308 = vpop.f32.mrf.mxu0
    %v309 = vadd.f32 %v220, %v308
    %v310 = vpop.f32.mrf.mxu0
    %311 = vdwg.mxu0
    %v312 = vmul.f32 %v282, 0.1
    %v313 = vmul.f32 %v285, 0.1
    %v314 = vmul.f32 %v290, 0.1
    %v315 = vmul.f32 %v293, 0.1
    %v316 = vmul.f32 %v298, 0.1
    %v317 = vmul.f32 %v301, 0.1
    %v318 = vmul.f32 %v306, 0.1
    %v319 = vmul.f32 %v309, 0.1
    %v320 = vmax.f32 %v282, %v312
    %v321 = vmax.f32 %v285, %v313
    %v322 = vmax.f32 %v290, %v314
    %v323 = vmax.f32 %v293, %v315
    %v324 = vmax.f32 %v298, %v316
    %v325 = vmax.f32 %v301, %v317
    %v326 = vmax.f32 %v306, %v318
    %v327 = vmax.f32 %v309, %v319
    %v328 = vpack.c.bf16 %v321, %v320
    %v329 = vpack.c.bf16 %v323, %v322
    %v330 = vpack.c.bf16 %v325, %v324
    %v331 = vpack.c.bf16 %v327, %v326
    %s332 = scalar_lea.vmem %s2, 16
    %v333 = vld [vmem:[%s332] sm:$0xf]
    %v334 = vld [vmem:[%s332 + $0x4] sm:$0xf]
    %v335 = vld [vmem:[%s332 + $0x8] sm:$0xf]
    %v336 = vld [vmem:[%s332 + $0xc] sm:$0xf]
    %v341 = vunpack.c.l.b16 %v333
    %v342 = vunpack.c.l.b16 %v334
    %v343 = vunpack.c.l.b16 %v335
    %v344 = vunpack.c.l.b16 %v336
    %v345 = vpack.c.b16 %v342, %v341
    %v346 = vpack.c.b16 %v344, %v343
    %v350 = vsel %vm234, %v328, 0
    %v353 = vsel %vm234, %v329, 0
    %v356 = vsel %vm234, %v330, 0
    %v359 = vsel %vm234, %v331, 0
    %361 = vmatprep.subr.bf16.mxu0 0
    %362 = vmatpush1.bf16.msra.mxu0 0
    %363 = vmatprep.subr.bf16.mxu0 0
    %364 = vmatpush1.bf16.msra.mxu0 0
    %365 = vmatprep.subr.bf16.mxu0 0
    %366 = vmatpush1.bf16.msra.mxu0 0
    %367 = vmatprep.subr.bf16.mxu0 0
    %368 = vmatpush1.bf16.msra.mxu0 0
    %369 = vmatprep.subr.bf16.mxu0 0
    %370 = vmatpush1.bf16.msra.mxu0 0
    %371 = vmatprep.subr.bf16.mxu0 0
    %372 = vmatpush1.bf16.msra.mxu0 0
    %373 = vmatprep.subr.bf16.mxu0 0
    %374 = vmatpush1.bf16.msra.mxu0 %v346
    %375 = vmatprep.subr.bf16.mxu0 0
    %376 = vmatpush1.bf16.msra.mxu0 %v345
    %377 = vmatprep.subr.bf16.mxu0 0
    %378 = vmatpush2.bf16.msra.mxu0 0
    %379 = vmatprep.subr.bf16.mxu0 0
    %380 = vmatpush2.bf16.msra.mxu0 0
    %381 = vmatprep.subr.bf16.mxu0 0
    %382 = vmatpush2.bf16.msra.mxu0 0
    %383 = vmatprep.subr.bf16.mxu0 0
    %384 = vmatpush2.bf16.msra.mxu0 0
    %385 = vmatprep.subr.bf16.mxu0 0
    %386 = vmatpush2.bf16.msra.mxu0 0
    %387 = vmatprep.subr.bf16.mxu0 0
    %388 = vmatpush2.bf16.msra.mxu0 0
    %389 = vmatprep.subr.bf16.mxu0 0
    %390 = vmatpush2.bf16.msra.mxu0 0
    %391 = vmatprep.subr.bf16.mxu0 0
    %392 = vmatpush2.bf16.msra.mxu0 0
    %393 = vmatprep.mubr.bf16.mxu0 0
    %394 = vmatmul.mubr.bf16.gmra.mxu0 %v350
    %v395 = vpop.f32.mrf.mxu0
    %v396 = vadd.f32 0.0, %v395
    %v397 = vpop.f32.mrf.mxu0
    %v398 = vpop.f32.mrf.mxu0
    %v399 = vadd.f32 0.0, %v398
    %v400 = vpop.f32.mrf.mxu0
    %401 = vmatprep.mubr.bf16.mxu0 0
    %402 = vmatmul.mubr.bf16.gmra.mxu0 %v353
    %v403 = vpop.f32.mrf.mxu0
    %v404 = vadd.f32 0.0, %v403
    %v405 = vpop.f32.mrf.mxu0
    %v406 = vpop.f32.mrf.mxu0
    %v407 = vadd.f32 0.0, %v406
    %v408 = vpop.f32.mrf.mxu0
    %409 = vmatprep.mubr.bf16.mxu0 0
    %410 = vmatmul.mubr.bf16.gmra.mxu0 %v356
    %v411 = vpop.f32.mrf.mxu0
    %v412 = vadd.f32 0.0, %v411
    %v413 = vpop.f32.mrf.mxu0
    %v414 = vpop.f32.mrf.mxu0
    %v415 = vadd.f32 0.0, %v414
    %v416 = vpop.f32.mrf.mxu0
    %417 = vmatprep.mubr.bf16.mxu0 0
    %418 = vmatmul.mubr.bf16.gmra.mxu0 %v359
    %v419 = vpop.f32.mrf.mxu0
    %v420 = vadd.f32 0.0, %v419
    %v421 = vpop.f32.mrf.mxu0
    %v422 = vpop.f32.mrf.mxu0
    %v423 = vadd.f32 0.0, %v422
    %v424 = vpop.f32.mrf.mxu0
    %425 = vdwg.mxu0
    %v426 = vpack.c.bf16 %v399, %v396
    %v427 = vpack.c.bf16 %v407, %v404
    %v428 = vpack.c.bf16 %v415, %v412
    %v429 = vpack.c.bf16 %v423, %v420
    %s430 = scalar_lea.vmem [#allocation5], 1
    %v431 = vld [vmem:[%s430] sm:$0x1]
    %v433 = vlaneseq
    %v434 = vshrl.u32 %v433, 7
    %v435 = vsub.s32 0, %v434
    %v436 = vrot.slane %v431, %v435
    %438 = vmatprep.subr.bf16.mxu0 0
    %439 = vmatpush1.bf16.msra.mxu0 0
    %440 = vmatprep.subr.bf16.mxu0 0
    %441 = vmatpush1.bf16.msra.mxu0 0
    %442 = vmatprep.subr.bf16.mxu0 0
    %443 = vmatpush1.bf16.msra.mxu0 0
    %444 = vmatprep.subr.bf16.mxu0 0
    %445 = vmatpush1.bf16.msra.mxu0 0
    %446 = vmatprep.subr.bf16.mxu0 0
    %447 = vmatpush1.bf16.msra.mxu0 %v429
    %448 = vmatprep.subr.bf16.mxu0 0
    %449 = vmatpush1.bf16.msra.mxu0 %v428
    %450 = vmatprep.subr.bf16.mxu0 0
    %451 = vmatpush1.bf16.msra.mxu0 %v427
    %452 = vmatprep.subr.bf16.mxu0 0
    %453 = vmatpush1.bf16.msra.mxu0 %v426
    %454 = vmatprep.subr.bf16.mxu0 0
    %455 = vmatpush2.bf16.msra.mxu0 0
    %456 = vmatprep.subr.bf16.mxu0 0
    %457 = vmatpush2.bf16.msra.mxu0 0
    %458 = vmatprep.subr.bf16.mxu0 0
    %459 = vmatpush2.bf16.msra.mxu0 0
    %460 = vmatprep.subr.bf16.mxu0 0
    %461 = vmatpush2.bf16.msra.mxu0 0
    %462 = vmatprep.subr.bf16.mxu0 0
    %463 = vmatpush2.bf16.msra.mxu0 0
    %464 = vmatprep.subr.bf16.mxu0 0
    %465 = vmatpush2.bf16.msra.mxu0 0
    %466 = vmatprep.subr.bf16.mxu0 0
    %467 = vmatpush2.bf16.msra.mxu0 0
    %468 = vmatprep.subr.bf16.mxu0 0
    %469 = vmatpush2.bf16.msra.mxu0 0
    %470 = vmatprep.mubr.bf16.mxu0 0
    %471 = vmatmul.mubr.bf16.gmra.mxu0 %v131
    %v472 = vpop.f32.mrf.mxu0
    %v473 = vadd.f32 %v436, %v472
    %v474 = vpop.f32.mrf.mxu0
    %v475 = vpop.f32.mrf.mxu0
    %v476 = vadd.f32 %v436, %v475
    %v477 = vpop.f32.mrf.mxu0
    %478 = vmatprep.mubr.bf16.mxu0 0
    %479 = vmatmul.mubr.bf16.gmra.mxu0 %v134
    %v480 = vpop.f32.mrf.mxu0
    %v481 = vadd.f32 %v436, %v480
    %v482 = vpop.f32.mrf.mxu0
    %v483 = vpop.f32.mrf.mxu0
    %v484 = vadd.f32 %v436, %v483
    %v485 = vpop.f32.mrf.mxu0
    %486 = vmatprep.mubr.bf16.mxu0 0
    %487 = vmatmul.mubr.bf16.gmra.mxu0 %v137
    %v488 = vpop.f32.mrf.mxu0
    %v489 = vadd.f32 %v436, %v488
    %v490 = vpop.f32.mrf.mxu0
    %v491 = vpop.f32.mrf.mxu0
    %v492 = vadd.f32 %v436, %v491
    %v493 = vpop.f32.mrf.mxu0
    %494 = vmatprep.mubr.bf16.mxu0 0
    %495 = vmatmul.mubr.bf16.gmra.mxu0 %v140
    %v496 = vpop.f32.mrf.mxu0
    %v497 = vadd.f32 %v436, %v496
    %v498 = vpop.f32.mrf.mxu0
    %v499 = vpop.f32.mrf.mxu0
    %v500 = vadd.f32 %v436, %v499
    %v501 = vpop.f32.mrf.mxu0
    %502 = vdwg.mxu0
    %v503 = vmul.f32 %v473, 0.1
    %v504 = vmul.f32 %v476, 0.1
    %v505 = vmul.f32 %v481, 0.1
    %v506 = vmul.f32 %v484, 0.1
    %v507 = vmul.f32 %v489, 0.1
    %v508 = vmul.f32 %v492, 0.1
    %v509 = vmul.f32 %v497, 0.1
    %v510 = vmul.f32 %v500, 0.1
    %v511 = vmax.f32 %v473, %v503
    %v512 = vmax.f32 %v476, %v504
    %v513 = vmax.f32 %v481, %v505
    %v514 = vmax.f32 %v484, %v506
    %v515 = vmax.f32 %v489, %v507
    %v516 = vmax.f32 %v492, %v508
    %v517 = vmax.f32 %v497, %v509
    %v518 = vmax.f32 %v500, %v510
    %v519 = vpack.c.bf16 %v512, %v511
    %v520 = vpack.c.bf16 %v514, %v513
    %v521 = vpack.c.bf16 %v516, %v515
    %v522 = vpack.c.bf16 %v518, %v517
    %s523 = scalar_lea.vmem %s2, 32
    %v524 = vld [vmem:[%s523] sm:$0xf]
    %v525 = vld [vmem:[%s523 + $0x4] sm:$0xf]
    %v526 = vld [vmem:[%s523 + $0x8] sm:$0xf]
    %v527 = vld [vmem:[%s523 + $0xc] sm:$0xf]
    %v532 = vunpack.c.l.b16 %v524
    %v533 = vunpack.c.l.b16 %v525
    %v534 = vunpack.c.l.b16 %v526
    %v535 = vunpack.c.l.b16 %v527
    %v536 = vpack.c.b16 %v533, %v532
    %v537 = vpack.c.b16 %v535, %v534
    %v541 = vsel %vm234, %v519, 0
    %v544 = vsel %vm234, %v520, 0
    %v547 = vsel %vm234, %v521, 0
    %v550 = vsel %vm234, %v522, 0
    %552 = vmatprep.subr.bf16.mxu0 0
    %553 = vmatpush1.bf16.msra.mxu0 0
    %554 = vmatprep.subr.bf16.mxu0 0
    %555 = vmatpush1.bf16.msra.mxu0 0
    %556 = vmatprep.subr.bf16.mxu0 0
    %557 = vmatpush1.bf16.msra.mxu0 0
    %558 = vmatprep.subr.bf16.mxu0 0
    %559 = vmatpush1.bf16.msra.mxu0 0
    %560 = vmatprep.subr.bf16.mxu0 0
    %561 = vmatpush1.bf16.msra.mxu0 0
    %562 = vmatprep.subr.bf16.mxu0 0
    %563 = vmatpush1.bf16.msra.mxu0 0
    %564 = vmatprep.subr.bf16.mxu0 0
    %565 = vmatpush1.bf16.msra.mxu0 %v537
    %566 = vmatprep.subr.bf16.mxu0 0
    %567 = vmatpush1.bf16.msra.mxu0 %v536
    %568 = vmatprep.subr.bf16.mxu0 0
    %569 = vmatpush2.bf16.msra.mxu0 0
    %570 = vmatprep.subr.bf16.mxu0 0
    %571 = vmatpush2.bf16.msra.mxu0 0
    %572 = vmatprep.subr.bf16.mxu0 0
    %573 = vmatpush2.bf16.msra.mxu0 0
    %574 = vmatprep.subr.bf16.mxu0 0
    %575 = vmatpush2.bf16.msra.mxu0 0
    %576 = vmatprep.subr.bf16.mxu0 0
    %577 = vmatpush2.bf16.msra.mxu0 0
    %578 = vmatprep.subr.bf16.mxu0 0
    %579 = vmatpush2.bf16.msra.mxu0 0
    %580 = vmatprep.subr.bf16.mxu0 0
    %581 = vmatpush2.bf16.msra.mxu0 0
    %582 = vmatprep.subr.bf16.mxu0 0
    %583 = vmatpush2.bf16.msra.mxu0 0
    %584 = vmatprep.mubr.bf16.mxu0 0
    %585 = vmatmul.mubr.bf16.gmra.mxu0 %v541
    %v586 = vpop.f32.mrf.mxu0
    %v587 = vadd.f32 0.0, %v586
    %v588 = vpop.f32.mrf.mxu0
    %v589 = vpop.f32.mrf.mxu0
    %v590 = vadd.f32 0.0, %v589
    %v591 = vpop.f32.mrf.mxu0
    %592 = vmatprep.mubr.bf16.mxu0 0
    %593 = vmatmul.mubr.bf16.gmra.mxu0 %v544
    %v594 = vpop.f32.mrf.mxu0
    %v595 = vadd.f32 0.0, %v594
    %v596 = vpop.f32.mrf.mxu0
    %v597 = vpop.f32.mrf.mxu0
    %v598 = vadd.f32 0.0, %v597
    %v599 = vpop.f32.mrf.mxu0
    %600 = vmatprep.mubr.bf16.mxu0 0
    %601 = vmatmul.mubr.bf16.gmra.mxu0 %v547
    %v602 = vpop.f32.mrf.mxu0
    %v603 = vadd.f32 0.0, %v602
    %v604 = vpop.f32.mrf.mxu0
    %v605 = vpop.f32.mrf.mxu0
    %v606 = vadd.f32 0.0, %v605
    %v607 = vpop.f32.mrf.mxu0
    %608 = vmatprep.mubr.bf16.mxu0 0
    %609 = vmatmul.mubr.bf16.gmra.mxu0 %v550
    %v610 = vpop.f32.mrf.mxu0
    %v611 = vadd.f32 0.0, %v610
    %v612 = vpop.f32.mrf.mxu0
    %v613 = vpop.f32.mrf.mxu0
    %v614 = vadd.f32 0.0, %v613
    %v615 = vpop.f32.mrf.mxu0
    %616 = vdwg.mxu0
    %v617 = vpack.c.bf16 %v590, %v587
    %v618 = vpack.c.bf16 %v598, %v595
    %v619 = vpack.c.bf16 %v606, %v603
    %v620 = vpack.c.bf16 %v614, %v611
    %s621 = scalar_lea.vmem [#allocation5], 2
    %v622 = vld [vmem:[%s621] sm:$0x1]
    %v624 = vlaneseq
    %v625 = vshrl.u32 %v624, 7
    %v626 = vsub.s32 0, %v625
    %v627 = vrot.slane %v622, %v626
    %629 = vmatprep.subr.bf16.mxu0 0
    %630 = vmatpush1.bf16.msra.mxu0 0
    %631 = vmatprep.subr.bf16.mxu0 0
    %632 = vmatpush1.bf16.msra.mxu0 0
    %633 = vmatprep.subr.bf16.mxu0 0
    %634 = vmatpush1.bf16.msra.mxu0 0
    %635 = vmatprep.subr.bf16.mxu0 0
    %636 = vmatpush1.bf16.msra.mxu0 0
    %637 = vmatprep.subr.bf16.mxu0 0
    %638 = vmatpush1.bf16.msra.mxu0 %v620
    %639 = vmatprep.subr.bf16.mxu0 0
    %640 = vmatpush1.bf16.msra.mxu0 %v619
    %641 = vmatprep.subr.bf16.mxu0 0
    %642 = vmatpush1.bf16.msra.mxu0 %v618
    %643 = vmatprep.subr.bf16.mxu0 0
    %644 = vmatpush1.bf16.msra.mxu0 %v617
    %645 = vmatprep.subr.bf16.mxu0 0
    %646 = vmatpush2.bf16.msra.mxu0 0
    %647 = vmatprep.subr.bf16.mxu0 0
    %648 = vmatpush2.bf16.msra.mxu0 0
    %649 = vmatprep.subr.bf16.mxu0 0
    %650 = vmatpush2.bf16.msra.mxu0 0
    %651 = vmatprep.subr.bf16.mxu0 0
    %652 = vmatpush2.bf16.msra.mxu0 0
    %653 = vmatprep.subr.bf16.mxu0 0
    %654 = vmatpush2.bf16.msra.mxu0 0
    %655 = vmatprep.subr.bf16.mxu0 0
    %656 = vmatpush2.bf16.msra.mxu0 0
    %657 = vmatprep.subr.bf16.mxu0 0
    %658 = vmatpush2.bf16.msra.mxu0 0
    %659 = vmatprep.subr.bf16.mxu0 0
    %660 = vmatpush2.bf16.msra.mxu0 0
    %661 = vmatprep.mubr.bf16.mxu0 0
    %662 = vmatmul.mubr.bf16.gmra.mxu0 %v131
    %v663 = vpop.f32.mrf.mxu0
    %v664 = vadd.f32 %v627, %v663
    %v665 = vpop.f32.mrf.mxu0
    %v666 = vpop.f32.mrf.mxu0
    %v667 = vadd.f32 %v627, %v666
    %v668 = vpop.f32.mrf.mxu0
    %669 = vmatprep.mubr.bf16.mxu0 0
    %670 = vmatmul.mubr.bf16.gmra.mxu0 %v134
    %v671 = vpop.f32.mrf.mxu0
    %v672 = vadd.f32 %v627, %v671
    %v673 = vpop.f32.mrf.mxu0
    %v674 = vpop.f32.mrf.mxu0
    %v675 = vadd.f32 %v627, %v674
    %v676 = vpop.f32.mrf.mxu0
    %677 = vmatprep.mubr.bf16.mxu0 0
    %678 = vmatmul.mubr.bf16.gmra.mxu0 %v137
    %v679 = vpop.f32.mrf.mxu0
    %v680 = vadd.f32 %v627, %v679
    %v681 = vpop.f32.mrf.mxu0
    %v682 = vpop.f32.mrf.mxu0
    %v683 = vadd.f32 %v627, %v682
    %v684 = vpop.f32.mrf.mxu0
    %685 = vmatprep.mubr.bf16.mxu0 0
    %686 = vmatmul.mubr.bf16.gmra.mxu0 %v140
    %v687 = vpop.f32.mrf.mxu0
    %v688 = vadd.f32 %v627, %v687
    %v689 = vpop.f32.mrf.mxu0
    %v690 = vpop.f32.mrf.mxu0
    %v691 = vadd.f32 %v627, %v690
    %v692 = vpop.f32.mrf.mxu0
    %693 = vdwg.mxu0
    %v694 = vmul.f32 %v664, 0.1
    %v695 = vmul.f32 %v667, 0.1
    %v696 = vmul.f32 %v672, 0.1
    %v697 = vmul.f32 %v675, 0.1
    %v698 = vmul.f32 %v680, 0.1
    %v699 = vmul.f32 %v683, 0.1
    %v700 = vmul.f32 %v688, 0.1
    %v701 = vmul.f32 %v691, 0.1
    %v702 = vmax.f32 %v664, %v694
    %v703 = vmax.f32 %v667, %v695
    %v704 = vmax.f32 %v672, %v696
    %v705 = vmax.f32 %v675, %v697
    %v706 = vmax.f32 %v680, %v698
    %v707 = vmax.f32 %v683, %v699
    %v708 = vmax.f32 %v688, %v700
    %v709 = vmax.f32 %v691, %v701
    %v710 = vld [vmem:[%s4] sm:$0xf]
    %v711 = vpack.c.bf16 %v703, %v702
    %v712 = vpack.c.bf16 %v705, %v704
    %v713 = vpack.c.bf16 %v707, %v706
    %v714 = vpack.c.bf16 %v709, %v708
    %v716 = vsel %vm129, %v710, 0
    %718 = vmatprep.subr.bf16.mxu0 0
    %719 = vmatpush1.bf16.msra.mxu0 0
    %720 = vmatprep.subr.bf16.mxu0 0
    %721 = vmatpush1.bf16.msra.mxu0 0
    %722 = vmatprep.subr.bf16.mxu0 0
    %723 = vmatpush1.bf16.msra.mxu0 0
    %724 = vmatprep.subr.bf16.mxu0 0
    %725 = vmatpush1.bf16.msra.mxu0 0
    %726 = vmatprep.subr.bf16.mxu0 0
    %727 = vmatpush1.bf16.msra.mxu0 %v714
    %728 = vmatprep.subr.bf16.mxu0 0
    %729 = vmatpush1.bf16.msra.mxu0 %v713
    %730 = vmatprep.subr.bf16.mxu0 0
    %731 = vmatpush1.bf16.msra.mxu0 %v712
    %732 = vmatprep.subr.bf16.mxu0 0
    %733 = vmatpush1.bf16.msra.mxu0 %v711
    %734 = vmatprep.subr.bf16.mxu0 0
    %735 = vmatpush2.bf16.msra.mxu0 0
    %736 = vmatprep.subr.bf16.mxu0 0
    %737 = vmatpush2.bf16.msra.mxu0 0
    %738 = vmatprep.subr.bf16.mxu0 0
    %739 = vmatpush2.bf16.msra.mxu0 0
    %740 = vmatprep.subr.bf16.mxu0 0
    %741 = vmatpush2.bf16.msra.mxu0 0
    %742 = vmatprep.subr.bf16.mxu0 0
    %743 = vmatpush2.bf16.msra.mxu0 0
    %744 = vmatprep.subr.bf16.mxu0 0
    %745 = vmatpush2.bf16.msra.mxu0 0
    %746 = vmatprep.subr.bf16.mxu0 0
    %747 = vmatpush2.bf16.msra.mxu0 0
    %748 = vmatprep.subr.bf16.mxu0 0
    %749 = vmatpush2.bf16.msra.mxu0 0
    %750 = vmatprep.mubr.bf16.mxu0 0
    %751 = vmatmul.mubr.bf16.gmra.mxu0 %v716
    %v752 = vpop.f32.mrf.mxu0
    %v753 = vadd.f32 0.0, %v752
    %v754 = vpop.f32.mrf.mxu0
    %v755 = vpop.f32.mrf.mxu0
    %v756 = vpop.f32.mrf.mxu0
    %757 = vdwg.mxu0
    %v758 = vpack.c.bf16 %v753, %v753
    %v759 = vld [vmem:[#allocation7] sm:$0xf]
    %v760 = vld [vmem:[#allocation7 + $0x4] sm:$0xf]
    %v761 = vld [vmem:[#allocation7 + $0x8] sm:$0xf]
    %v762 = vld [vmem:[#allocation7 + $0xc] sm:$0xf]
    %v763 = vld [vmem:[%s6] sm:$0x1]
    %v765 = vlaneseq
    %v766 = vshrl.u32 %v765, 7
    %v767 = vsub.s32 0, %v766
    %v768 = vrot.slane %v763, %v767
    %v774 = vunpack.c.l.b16 %v759
    %v775 = vunpack.c.l.b16 %v760
    %v776 = vunpack.c.l.b16 %v761
    %v777 = vunpack.c.l.b16 %v762
    %v778 = vpack.c.b16 %v775, %v774
    %v779 = vpack.c.b16 %v777, %v776
    %v783 = vsel %vm234, %v758, 0
    %785 = vmatprep.subr.bf16.mxu0 0
    %786 = vmatpush1.bf16.msra.mxu0 0
    %787 = vmatprep.subr.bf16.mxu0 0
    %788 = vmatpush1.bf16.msra.mxu0 0
    %789 = vmatprep.subr.bf16.mxu0 0
    %790 = vmatpush1.bf16.msra.mxu0 0
    %791 = vmatprep.subr.bf16.mxu0 0
    %792 = vmatpush1.bf16.msra.mxu0 0
    %793 = vmatprep.subr.bf16.mxu0 0
    %794 = vmatpush1.bf16.msra.mxu0 0
    %795 = vmatprep.subr.bf16.mxu0 0
    %796 = vmatpush1.bf16.msra.mxu0 0
    %797 = vmatprep.subr.bf16.mxu0 0
    %798 = vmatpush1.bf16.msra.mxu0 %v779
    %799 = vmatprep.subr.bf16.mxu0 0
    %800 = vmatpush1.bf16.msra.mxu0 %v778
    %801 = vmatprep.subr.bf16.mxu0 0
    %802 = vmatpush2.bf16.msra.mxu0 0
    %803 = vmatprep.subr.bf16.mxu0 0
    %804 = vmatpush2.bf16.msra.mxu0 0
    %805 = vmatprep.subr.bf16.mxu0 0
    %806 = vmatpush2.bf16.msra.mxu0 0
    %807 = vmatprep.subr.bf16.mxu0 0
    %808 = vmatpush2.bf16.msra.mxu0 0
    %809 = vmatprep.subr.bf16.mxu0 0
    %810 = vmatpush2.bf16.msra.mxu0 0
    %811 = vmatprep.subr.bf16.mxu0 0
    %812 = vmatpush2.bf16.msra.mxu0 0
    %813 = vmatprep.subr.bf16.mxu0 0
    %814 = vmatpush2.bf16.msra.mxu0 0
    %815 = vmatprep.subr.bf16.mxu0 0
    %816 = vmatpush2.bf16.msra.mxu0 0
    %817 = vmatprep.mubr.bf16.mxu0 0
    %818 = vmatmul.mubr.bf16.gmra.mxu0 %v783
    %v819 = vpop.f32.mrf.mxu0
    %v820 = vadd.f32 %v768, %v819
    %v821 = vpop.f32.mrf.mxu0
    %v822 = vpop.f32.mrf.mxu0
    %v823 = vpop.f32.mrf.mxu0
    %824 = vdwg.mxu0
    %825 = vst [vmem:[#allocation8] sm:$0xff] %v820
    // Predicated region
    $region42: #{tpu_custom_call.1} parent=1 // pred_check
      _
    $region43: #{tpu_custom_call.1} parent=1 // pred_check_branch
      %827 = sbr.rel (0) target = $region45
    $region44: #{tpu_custom_call.1} parent=1 // pred_region
      %s829 = ssub.s32 128, 128
      %830 = vsyncadd [#allocation4], %s829
      %s832 = sshll.u32 [#allocation8], 4
      %s833 = int_to_ptr.vmem [resolvable:$true] %s832
      %835 = dma.vmem_to_hbm [thread:$0]  %s833, 128, %s7, [#allocation4]
    $region45: #{tpu_custom_call.1} parent=1 // pred_fallthru
      _
    // Predicated region
    $region46: #{tpu_custom_call.1} parent=1 // pred_check
      _
    $region47: #{tpu_custom_call.1} parent=1 // pred_check_branch
      %837 = sbr.rel (0) target = $region49
    $region48: #{tpu_custom_call.1} parent=1 // pred_region
      %838 = dma.done [#allocation4], 128
    $region49: #{tpu_custom_call.1} parent=1 // pred_fallthru
      _
    %839 = vsyncpa [#allocation3], 1
    %840 = vsyncpa [#allocation6], 1
    %841 = vsyncpa [#allocation4], 1

</llo_original>
